<compile_context>
chip_gen: v7x
topology: tpu7x:2x2x1
jax: 0.10.0
libtpu: 0.0.40
codegen_flags: <defaults>
</compile_context>

<pallas_src>
import functools
import math

import jax
import jax.numpy as jnp
from jax import lax
from jax.experimental import pallas as pl
from jax.experimental.pallas import tpu as pltpu

OUT_HW = 128                 # the module hard-codes interpolate to (128, 128)
_MIN_STEP_BYTES = 1 << 20    # keep per-step pred+target DMA >= ~1 MiB
_MIN_GRID_STEPS = 4          # enough grid steps for DMA/compute pipelining


# --------------------------------------------------------------------------- #
# Kernel
# --------------------------------------------------------------------------- #
def _downscale_l1_kernel(ph_ref, pw_ref, pred_ref, targ_ref, out_ref,
                         *, planes, h, tw, nw):
    """One grid step: `planes` (n,c) image planes x one W-chunk of width `tw`."""
    if nw > 1:
        # Zero this batch-block's partial on the first W-chunk only.
        @pl.when(pl.program_id(1) == 0)
        def _():
            out_ref[...] = jnp.zeros_like(out_ref)

    ph = ph_ref[...]                              # (128, h)  0/1 row-selectors
    pw = pw_ref[...]                              # (tw, 128) 0/1 col-selectors

    def plane_step(b, acc):
        # Per-plane diff in the native dtype (bf16 stays bf16, f32 stays f32):
        # no f32<->bf16 round-trip passes and no (planes,h,tw) temporary.
        db = pred_ref[b] - targ_ref[b]            # (h, tw)
        if h >= tw:                               # contract the larger dim first
            t1 = jnp.dot(ph, db, preferred_element_type=jnp.float32)      # (128, tw)
            ds = jnp.dot(t1, pw.astype(jnp.float32),
                         preferred_element_type=jnp.float32)              # (128, 128)
        else:
            t1 = jnp.dot(db, pw, preferred_element_type=jnp.float32)      # (h, 128)
            ds = jnp.dot(ph.astype(jnp.float32), t1,
                         preferred_element_type=jnp.float32)              # (128, 128)
        # ph/pw are 0/1 selectors -> ds is the exact block *sum*.  W-chunks are
        # multiples of kw, so every pooled column is either entirely inside this
        # chunk or exactly zero; abs + accumulate across chunks is exact.
        return acc + jnp.abs(ds)

    acc = lax.fori_loop(0, planes, plane_step,
                        jnp.zeros((OUT_HW, OUT_HW), jnp.float32),
                        unroll=True)

    if nw == 1:
        out_ref[0] = acc                          # single visit: no read-modify-write
    else:
        out_ref[0] += acc


# --------------------------------------------------------------------------- #
# Tiling / VMEM sizing
# --------------------------------------------------------------------------- #
def _vmem_budget():
    """(physical_vmem, scoped_vmem_limit, tiler working-set budget) for this chip."""
    try:
        phys = int(pltpu.get_tpu_info().vmem_capacity_bytes)
    except Exception:                       # conservative fallback (v7x per-TC VMEM)
        phys = 64 * 1024 * 1024
    limit = min(phys * 3 // 4, 96 * 1024 * 1024)   # v7x ~48 MiB, v5e/v6e 96 MiB
    budget = int(limit * 0.7)                      # headroom for internal scratch
    return phys, limit, budget


def _footprint_bytes(planes, h, tw, itemsize):
    """Rough VMEM working-set for one grid step (inputs double-buffered)."""
    inputs = 2 * 2 * planes * h * tw * itemsize              # pred + target blocks
    diff = h * tw * itemsize                                 # one per-plane diff temp
    sel = 2 * 2 * (OUT_HW * h + tw * OUT_HW) * itemsize      # ph + pw (double-buffered)
    inter = (max(h, tw) * OUT_HW + 2 * OUT_HW * OUT_HW) * 4  # t1 + accumulator (f32)
    outb = 2 * OUT_HW * OUT_HW * 4                           # output partial block
    return inputs + diff + sel + inter + outb


def _choose_tiles(nc, h, w, kw, itemsize, budget):
    """Pick (planes_per_step, w_chunk).

    Preference order (review-driven): fit the VMEM budget; keep nb >= 2 so the
    'parallel' axis can be split across v7x's two TensorCores; keep nb*nw >= 4
    grid steps so BlockSpec double-buffering actually pipelines; then take the
    biggest per-step block (fewest steps, densest DMAs).
    """
    # W-chunk must be a multiple of 128 (lanes) and of kw (pooling boundaries).
    tw_unit = (OUT_HW * kw) // math.gcd(OUT_HW, kw)
    tw_cands = [t for t in range(tw_unit, w + 1, tw_unit) if w % t == 0]
    fitting = [t for t in tw_cands if _footprint_bytes(1, h, t, itemsize) <= budget]

    if not fitting:
        tw = tw_unit        # very tall H: smallest legal tile; caller raises vmem limit
    else:
        tw = fitting[-1]    # biggest W-chunk that fits with a single plane
        # If a single-plane grid would have too few steps for pipelining, shrink
        # tw (more W-chunks) as long as per-step input bytes stay >= ~1 MiB.
        while nc * (w // tw) < _MIN_GRID_STEPS:
            smaller = [t for t in fitting
                       if t < tw and 2 * h * t * itemsize >= _MIN_STEP_BYTES]
            if not smaller:
                break
            tw = smaller[-1]
    nw = w // tw

    # planes: biggest divisor of nc that still fits the budget while keeping
    # nb >= 2 (megacore) and nb*nw >= 4 (pipelining), whenever achievable.
    want_steps = nc * nw >= _MIN_GRID_STEPS
    planes = 1
    for p in range(1, nc + 1):
        if nc % p:
            continue
        nb = nc // p
        if _footprint_bytes(p, h, tw, itemsize) > budget:
            continue
        if nc >= 2 and nb < 2:
            continue
        if want_steps and nb * nw < _MIN_GRID_STEPS:
            continue
        planes = max(planes, p)
    return planes, tw


# --------------------------------------------------------------------------- #
# Wrapper
# --------------------------------------------------------------------------- #
def downscale_loss(pred, target, weight=None, *, loss_weight=1.0, reduction="mean"):
    """Pallas implementation of DownScaleLoss.forward."""
    assert pred.shape == target.shape and pred.ndim == 4
    if weight is not None:
        # TODO(synk): the optional element-wise `weight` argument is not implemented.
        raise NotImplementedError("element-wise weight is not supported in the kernel path")
    if reduction not in ("mean", "sum"):
        # TODO(synk): reduction='none' (per-element downscaled map) is not implemented.
        raise NotImplementedError(f"reduction '{reduction}' not implemented in kernel path")

    n, c, h, w = pred.shape
    assert h % OUT_HW == 0 and w % OUT_HW == 0, (
        "kernel supports integer area-downscale factors (H, W multiples of 128)")
    # TODO(synk): non-integer 'area' scale factors are not implemented.

    kh, kw = h // OUT_HW, w // OUT_HW
    nc = n * c
    dt = pred.dtype

    # 0/1 pooling selectors in the input dtype (exact in bf16/f32).  The
    # 1/(kh*kw) mean scale is applied once, in f32, on the final reduced sum.
    ph = (jnp.arange(OUT_HW, dtype=jnp.int32)[:, None]
          == (jnp.arange(h, dtype=jnp.int32)[None, :] // kh)).astype(dt)    # (128, H)
    pw = ((jnp.arange(w, dtype=jnp.int32)[:, None] // kw)
          == jnp.arange(OUT_HW, dtype=jnp.int32)[None, :]).astype(dt)       # (W, 128)

    # Native dtype straight into the kernel: no wrapper astype / extra HBM pass.
    pred2 = pred.reshape(nc, h, w)
    targ2 = target.reshape(nc, h, w)

    itemsize = jnp.dtype(dt).itemsize
    phys, vmem_limit, budget = _vmem_budget()
    planes, tw = _choose_tiles(nc, h, w, kw, itemsize, budget)
    nb, nw = nc // planes, w // tw

    # Graceful degradation: if even the smallest legal tile overshoots the budget
    # (very tall H), raise the scoped-VMEM limit instead of failing to compile.
    fp = _footprint_bytes(planes, h, tw, itemsize)
    vmem_limit = min(max(vmem_limit, int(fp * 1.25)), phys - (2 << 20))

    kernel = functools.partial(_downscale_l1_kernel,
                               planes=planes, h=h, tw=tw, nw=nw)

    partials = pl.pallas_call(
        kernel,
        out_shape=jax.ShapeDtypeStruct((nb, OUT_HW, OUT_HW), jnp.float32),
        grid_spec=pltpu.PrefetchScalarGridSpec(
            num_scalar_prefetch=0,
            grid=(nb, nw),
            in_specs=[
                pl.BlockSpec((OUT_HW, h), lambda b, j: (0, 0)),         # ph (resident)
                pl.BlockSpec((tw, OUT_HW), lambda b, j: (j, 0)),        # pw W-chunk
                pl.BlockSpec((planes, h, tw), lambda b, j: (b, 0, j)),  # pred planes
                pl.BlockSpec((planes, h, tw), lambda b, j: (b, 0, j)),  # target planes
            ],
            out_specs=pl.BlockSpec((1, OUT_HW, OUT_HW), lambda b, j: (b, 0, 0)),
        ),
        compiler_params=pltpu.CompilerParams(
            dimension_semantics=("parallel", "arbitrary"),
            vmem_limit_bytes=vmem_limit),
    )(ph, pw, pred2, targ2)

    # Final tiny reduction + area-mean scale in f32 outside the kernel.
    total_abs = jnp.sum(partials, dtype=jnp.float32) / float(kh * kw)

    if reduction == "mean":
        loss = total_abs / float(nc * OUT_HW * OUT_HW)
    else:  # "sum"
        loss = total_abs
    return loss_weight * loss


# --------------------------------------------------------------------------- #
# Pure-JAX reference + self-test
# --------------------------------------------------------------------------- #
def _reference_loss(pred, target, loss_weight=1.0, reduction="mean"):
    """Integer-factor area interpolate + L1, in f32."""
    n, c, h, w = pred.shape
    kh, kw = h // OUT_HW, w // OUT_HW
    p = pred.astype(jnp.float32).reshape(n, c, OUT_HW, kh, OUT_HW, kw).mean(axis=(3, 5))
    t = target.astype(jnp.float32).reshape(n, c, OUT_HW, kh, OUT_HW, kw).mean(axis=(3, 5))
    d = jnp.abs(p - t)
    r = jnp.mean(d) if reduction == "mean" else jnp.sum(d)
    return loss_weight * r


if __name__ == "__main__":
    key = jax.random.PRNGKey(0)
    k1, k2 = jax.random.split(key)

    # Output spatial size is hard-coded to 128x128, so use a 2x area downscale
    # (256 -> 128) with a small batch/channel count.
    N, C, H, W = 2, 3, 256, 256
    pred = jax.random.normal(k1, (N, C, H, W), dtype=jnp.float32)
    target = jax.random.normal(k2, (N, C, H, W), dtype=jnp.float32)

    # f32 path, reduction='mean'
    loss = jax.block_until_ready(downscale_loss(pred, target, loss_weight=1.0,
                                                reduction="mean"))
    ref = jax.block_until_ready(_reference_loss(pred, target, 1.0, "mean"))
    assert jnp.isfinite(loss), "kernel produced non-finite loss"
    assert abs(float(loss) - float(ref)) < 1e-3 * max(1.0, abs(float(ref))), (
        f"f32 mismatch: kernel={float(loss)} ref={float(ref)}")

    # bf16 path (native-dtype DMA + bf16 VPU diff), reduction='sum'
    pred_bf = pred.astype(jnp.bfloat16)
    targ_bf = target.astype(jnp.bfloat16)
    loss_bf = jax.block_until_ready(downscale_loss(pred_bf, targ_bf,
                                                   loss_weight=2.0, reduction="sum"))
    ref_bf = jax.block_until_ready(_reference_loss(pred_bf, targ_bf, 2.0, "sum"))
    assert jnp.isfinite(loss_bf), "kernel produced non-finite bf16 loss"
    assert abs(float(loss_bf) - float(ref_bf)) < 2e-2 * max(1.0, abs(float(ref_bf))), (
        f"bf16 mismatch: kernel={float(loss_bf)} ref={float(ref_bf)}")

    print("KERNEL_OK")
</pallas_src>

<mosaic_0001>
module attributes {stable_mosaic.version = 11 : i64} {
  func.func @_downscale_l1_kernel(%arg0: i32, %arg1: i32, %arg2: memref<128x256xf32, #tpu.memory_space<vmem>>, %arg3: memref<256x128xf32, #tpu.memory_space<vmem>>, %arg4: memref<1x256x256xf32, #tpu.memory_space<vmem>>, %arg5: memref<1x256x256xf32, #tpu.memory_space<vmem>>, %arg6: memref<1x128x128xf32, #tpu.memory_space<vmem>>) attributes {dimension_semantics = [#tpu.dimension_semantics<parallel>, #tpu.dimension_semantics<arbitrary>], iteration_bounds = array<i64: 6, 1>, scalar_prefetch = 0 : i64, scratch_operands = 0 : i64, tpu.core_type = #tpu.core_type<tc>, window_params = [{pipeline_mode = #tpu.pipeline_mode<synchronous>, transform_indices = @transform_0, window_bounds = array<i64: 128, 256>}, {transform_indices = @transform_1, window_bounds = array<i64: 256, 128>}, {transform_indices = @transform_2, window_bounds = array<i64: 1, 256, 256>}, {transform_indices = @transform_3, window_bounds = array<i64: 1, 256, 256>}, {transform_indices = @transform_4, window_bounds = array<i64: 1, 128, 128>}]} {
    %c0 = arith.constant 0 : index
    %c0_0 = arith.constant 0 : index
    %0 = vector.load %arg2[%c0, %c0_0] : memref<128x256xf32, #tpu.memory_space<vmem>>, vector<128x256xf32>
    %c0_1 = arith.constant 0 : index
    %c0_2 = arith.constant 0 : index
    %1 = vector.load %arg3[%c0_1, %c0_2] : memref<256x128xf32, #tpu.memory_space<vmem>>, vector<256x128xf32>
    %cst = arith.constant 0.000000e+00 : f32
    %2 = vector.broadcast %cst : f32 to vector<128x128xf32>
    %c0_i32 = arith.constant 0 : i32
    %3 = arith.index_cast %c0_i32 : i32 to index
    %c0_3 = arith.constant 0 : index
    %c0_4 = arith.constant 0 : index
    %4 = vector.load %arg4[%3, %c0_3, %c0_4] : memref<1x256x256xf32, #tpu.memory_space<vmem>>, vector<1x256x256xf32>
    %5 = vector.shape_cast %4 : vector<1x256x256xf32> to vector<256x256xf32>
    %6 = arith.index_cast %c0_i32 : i32 to index
    %c0_5 = arith.constant 0 : index
    %c0_6 = arith.constant 0 : index
    %7 = vector.load %arg5[%6, %c0_5, %c0_6] : memref<1x256x256xf32, #tpu.memory_space<vmem>>, vector<1x256x256xf32>
    %8 = vector.shape_cast %7 : vector<1x256x256xf32> to vector<256x256xf32>
    %9 = arith.subf %5, %8 : vector<256x256xf32>
    %cst_7 = arith.constant dense<0.000000e+00> : vector<128x256xf32>
    %10 = tpu.matmul %0, %9, %cst_7 {dimension_numbers = #tpu.dot_dimension_numbers<[1], [0], [0], [1], [0, 0, 1, 1], [], []>} : vector<128x256xf32>, vector<256x256xf32>, vector<128x256xf32> -> vector<128x256xf32>
    %cst_8 = arith.constant dense<0.000000e+00> : vector<128x128xf32>
    %11 = tpu.matmul %10, %1, %cst_8 {dimension_numbers = #tpu.dot_dimension_numbers<[1], [0], [0], [1], [0, 0, 1, 1], [], []>} : vector<128x256xf32>, vector<256x128xf32>, vector<128x128xf32> -> vector<128x128xf32>
    %12 = math.absf %11 : vector<128x128xf32>
    %13 = arith.addf %2, %12 : vector<128x128xf32>
    %c1_i32 = arith.constant 1 : i32
    %c0_9 = arith.constant 0 : index
    %c0_10 = arith.constant 0 : index
    %c0_11 = arith.constant 0 : index
    %14 = vector.load %arg6[%c0_9, %c0_10, %c0_11] : memref<1x128x128xf32, #tpu.memory_space<vmem>>, vector<1x128x128xf32>
    %15 = vector.shape_cast %14 : vector<1x128x128xf32> to vector<128x128xf32>
    %16 = vector.shape_cast %13 : vector<128x128xf32> to vector<1x128x128xf32>
    tpu.vector_store %arg6[%c0_9, %c0_10, %c0_11], %16 {strides = array<i32>} : memref<1x128x128xf32, #tpu.memory_space<vmem>>, vector<1x128x128xf32>,
    return
  }
  func.func @transform_0(%arg0: i32, %arg1: i32) -> (i32, i32) {
    %c0_i32 = arith.constant 0 : i32
    %c0_i32_0 = arith.constant 0 : i32
    %c0_i32_1 = arith.constant 0 : i32
    return %c0_i32, %c0_i32_0 : i32, i32
  }
  func.func @transform_1(%arg0: i32, %arg1: i32) -> (i32, i32) {
    %c0_i32 = arith.constant 0 : i32
    %c0_i32_0 = arith.constant 0 : i32
    return %arg1, %c0_i32 : i32, i32
  }
  func.func @transform_2(%arg0: i32, %arg1: i32) -> (i32, i32, i32) {
    %c0_i32 = arith.constant 0 : i32
    %c0_i32_0 = arith.constant 0 : i32
    return %arg0, %c0_i32, %arg1 : i32, i32, i32
  }
  func.func @transform_3(%arg0: i32, %arg1: i32) -> (i32, i32, i32) {
    %c0_i32 = arith.constant 0 : i32
    %c0_i32_0 = arith.constant 0 : i32
    return %arg0, %c0_i32, %arg1 : i32, i32, i32
  }
  func.func @transform_4(%arg0: i32, %arg1: i32) -> (i32, i32, i32) {
    %c0_i32 = arith.constant 0 : i32
    %c0_i32_0 = arith.constant 0 : i32
    %c0_i32_1 = arith.constant 0 : i32
    return %arg0, %c0_i32, %c0_i32_0 : i32, i32, i32
  }
}

</mosaic_0001>

<llo_original>
// kernel: tpu_custom_call.1
$region0: #{tpu_custom_call.1}
  #allocation0 [shape = 'u32[]', space=smem, size = 0x4, offset = 0x4, fixed_abs, tag = 'smem constant byte address 0x4 - core index']
  #allocation1 [shape = 'u32[144,128]{1,0:T(1,128)}', space=vmem, size = 0x12000, scoped, tag = 'internal scratch']
  %s0 = inlined_call_operand.hbm [shape: f32[128,256], index: 0, kind: input, shape index: {}]
  %s1 = inlined_call_operand.hbm [shape: f32[256,128], index: 1, kind: input, shape index: {}]
  %s2 = inlined_call_operand.hbm [shape: f32[6,256,256], index: 2, kind: input, shape index: {}]
  %s3 = inlined_call_operand.hbm [shape: f32[6,256,256], index: 3, kind: input, shape index: {}]
  %s4 = inlined_call_operand.hbm [shape: f32[6,128,128], index: 4, kind: output, shape index: {}]
  %s5 = sld [smem:[#allocation0]]
  $region65: #{tpu_custom_call.1} parent=0
    _
  %s7 = ssub.s32 1, %s5
  %s8 = scalar_select 0, %s7, %s5
  $region1: #{tpu_custom_call.1} parent=0
    #allocation2 [shape = 'u8[131072]{0}', space=vmem, size = 0x20000, scoped, tag = 'input window, operand 0, single buffered']
    #allocation3 [shape = 's32[2]{0}', space=sflag, size = 0x8, scoped, tag = 'scoped memory for tpu_custom_call.1']
    #allocation4 [shape = 's32[2]{0}', space=sflag, size = 0x8, scoped, tag = 'scoped memory for tpu_custom_call.1']
    #allocation5 [shape = 'u8[131072]{0}', space=vmem, size = 0x20000, scoped, tag = 'input window, operand 1, single buffered']
    #allocation6 [shape = 's32[1]{0}', space=sflag, size = 0x4, scoped, tag = 'scoped memory for tpu_custom_call.1']
    #allocation7 [shape = 'u8[524288]{0}', space=vmem, size = 0x80000, scoped, tag = 'input window, operand 2']
    #allocation8 [shape = 'u8[524288]{0}', space=vmem, size = 0x80000, scoped, tag = 'input window, operand 3']
    #allocation9 [shape = 'u8[131072]{0}', space=vmem, size = 0x20000, scoped, tag = 'output window, operand 0']
    %9 = vsyncpa [#allocation3], 0
    %10 = vsyncpa [#allocation6], 0
    %11 = vsyncpa [#allocation4], 0
    %s12 = scalar_lea.sflag [#allocation4], 1
    %13 = vsyncpa %s12, 0
    loop: start=0, step=1, limit=8
    $region2: #{tpu_custom_call.1} parent=1 // loop_pre_header
      _
    $region3: #{tpu_custom_call.1} parent=1 // loop_header
      %s15 = sphi 0, %s19
      %p16 = scmp.ge.s32.totalorder %s15, 8
      %s22 = sphi 0, %s34
      %s23 = sphi 0, %s30
      %s24 = sphi 0, %s22
      %s25 = sphi 0, %s23
      %s26 = sphi 0, %s24
      %s27 = sphi 0, %s25
      %s35 = sphi 0, %s35
      %s37 = sphi 0, %s35
      %s38 = sphi 0, %s37
      %s52 = sphi 0, %s38
      %s58 = sphi 0, %s60
      %s61 = sphi 0, %s58
      %s62 = sphi 0, %s61
      %s78 = sphi 0, %s62
      %s86 = sphi 0, %s88
      %s89 = sphi 0, %s86
      %s90 = sphi 0, %s89
      %s106 = sphi 0, %s90
      %s114 = sphi 0, %s116
      %s117 = sphi 0, %s114
      %s118 = sphi 0, %s117
      %s134 = sphi 0, %s118
      %s140 = sphi 0, %s142
      %s143 = sphi 0, %s140
      %s144 = sphi 0, %s143
      %s160 = sphi 0, %s144
    $region4: #{tpu_custom_call.1} parent=1 // loop_header_branch
      %18 = sbr.rel (%p16) target = $region8
    $region5: #{tpu_custom_call.1} parent=1 // loop_body
      %s20 = ssub.s32 %s15, 1
      %s21 = ssub.s32 %s15, 2
      %s28 = sadd.s32 1, %s23
      %p29 = scmp.ge.s32.totalorder %s28, 1
      %s30 = scalar_select %p29, 0, %s28
      %s31 = sadd.s32 1, %s22
      %s32 = scalar_select %p29, %s31, %s22
      %p33 = scmp.ge.s32.totalorder %s32, 6
      %s34 = scalar_select %p33, 0, %s32
      %s36 = sadd.s32 %s35, 1
      %p39 = scmp.eq.s32.totalorder %s15, 5
      %p40 = scmp.ne.s32.totalorder %s35, %s37
      %p41 = scmp.eq.s32.totalorder %s15, 0
      %p42 = por %p40, %p41
      %p43 = scmp.ne.s32.totalorder %s35, %s37
      %p44 = scmp.eq.s32.totalorder %s20, 5
      %p45 = por %p43, %p44
      %p46 = scmp.ne.s32.totalorder %s37, %s38
      %p47 = scmp.eq.s32.totalorder %s20, 0
      %p48 = por %p46, %p47
      %p49 = scmp.ne.s32.totalorder %s37, %s38
      %p50 = scmp.eq.s32.totalorder %s21, 5
      %p51 = por %p49, %p50
      %p53 = scmp.ne.s32.totalorder %s38, %s52
      %p54 = scmp.eq.s32.totalorder %s21, 0
      %p55 = por %p53, %p54
      %s56 = ssub.s32 %s23, %s30
      %p57 = scmp.eq.s32.totalorder %s56, 0
      %s59 = sadd.s32 %s58, 1
      %s60 = scalar_select %p57, %s58, %s59
      %p63 = pneg %p57
      %p64 = scmp.eq.s32.totalorder %s15, 5
      %p65 = por %p63, %p64
      %p66 = scmp.ne.s32.totalorder %s58, %s61
      %p67 = scmp.eq.s32.totalorder %s15, 0
      %p68 = por %p66, %p67
      %p69 = scmp.ne.s32.totalorder %s58, %s61
      %p70 = scmp.eq.s32.totalorder %s20, 5
      %p71 = por %p69, %p70
      %p72 = scmp.ne.s32.totalorder %s61, %s62
      %p73 = scmp.eq.s32.totalorder %s20, 0
      %p74 = por %p72, %p73
      %p75 = scmp.ne.s32.totalorder %s61, %s62
      %p76 = scmp.eq.s32.totalorder %s21, 5
      %p77 = por %p75, %p76
      %p79 = scmp.ne.s32.totalorder %s62, %s78
      %p80 = scmp.eq.s32.totalorder %s21, 0
      %p81 = por %p79, %p80
      %s82 = ssub.s32 %s22, %s34
      %s83 = ssub.s32 %s23, %s30
      %s84 = sor.u32 %s82, %s83
      %p85 = scmp.eq.s32.totalorder %s84, 0
      %s87 = sadd.s32 %s86, 1
      %s88 = scalar_select %p85, %s86, %s87
      %p91 = pneg %p85
      %p92 = scmp.eq.s32.totalorder %s15, 5
      %p93 = por %p91, %p92
      %p94 = scmp.ne.s32.totalorder %s86, %s89
      %p95 = scmp.eq.s32.totalorder %s15, 0
      %p96 = por %p94, %p95
      %p97 = scmp.ne.s32.totalorder %s86, %s89
      %p98 = scmp.eq.s32.totalorder %s20, 5
      %p99 = por %p97, %p98
      %p100 = scmp.ne.s32.totalorder %s89, %s90
      %p101 = scmp.eq.s32.totalorder %s20, 0
      %p102 = por %p100, %p101
      %p103 = scmp.ne.s32.totalorder %s89, %s90
      %p104 = scmp.eq.s32.totalorder %s21, 5
      %p105 = por %p103, %p104
      %p107 = scmp.ne.s32.totalorder %s90, %s106
      %p108 = scmp.eq.s32.totalorder %s21, 0
      %p109 = por %p107, %p108
      %s110 = ssub.s32 %s22, %s34
      %s111 = ssub.s32 %s23, %s30
      %s112 = sor.u32 %s110, %s111
      %p113 = scmp.eq.s32.totalorder %s112, 0
      %s115 = sadd.s32 %s114, 1
      %s116 = scalar_select %p113, %s114, %s115
      %p119 = pneg %p113
      %p120 = scmp.eq.s32.totalorder %s15, 5
      %p121 = por %p119, %p120
      %p122 = scmp.ne.s32.totalorder %s114, %s117
      %p123 = scmp.eq.s32.totalorder %s15, 0
      %p124 = por %p122, %p123
      %p125 = scmp.ne.s32.totalorder %s114, %s117
      %p126 = scmp.eq.s32.totalorder %s20, 5
      %p127 = por %p125, %p126
      %p128 = scmp.ne.s32.totalorder %s117, %s118
      %p129 = scmp.eq.s32.totalorder %s20, 0
      %p130 = por %p128, %p129
      %p131 = scmp.ne.s32.totalorder %s117, %s118
      %p132 = scmp.eq.s32.totalorder %s21, 5
      %p133 = por %p131, %p132
      %p135 = scmp.ne.s32.totalorder %s118, %s134
      %p136 = scmp.eq.s32.totalorder %s21, 0
      %p137 = por %p135, %p136
      %s138 = ssub.s32 %s22, %s34
      %p139 = scmp.eq.s32.totalorder %s138, 0
      %s141 = sadd.s32 %s140, 1
      %s142 = scalar_select %p139, %s140, %s141
      %p145 = pneg %p139
      %p146 = scmp.eq.s32.totalorder %s15, 5
      %p147 = por %p145, %p146
      %p148 = scmp.ne.s32.totalorder %s140, %s143
      %p149 = scmp.eq.s32.totalorder %s15, 0
      %p150 = por %p148, %p149
      %p151 = scmp.ne.s32.totalorder %s140, %s143
      %p152 = scmp.eq.s32.totalorder %s20, 5
      %p153 = por %p151, %p152
      %p154 = scmp.ne.s32.totalorder %s143, %s144
      %p155 = scmp.eq.s32.totalorder %s20, 0
      %p156 = por %p154, %p155
      %p157 = scmp.ne.s32.totalorder %s143, %s144
      %p158 = scmp.eq.s32.totalorder %s21, 5
      %p159 = por %p157, %p158
      %p161 = scmp.ne.s32.totalorder %s144, %s160
      %p162 = scmp.eq.s32.totalorder %s21, 0
      %p163 = por %p161, %p162
      %p164 = scmp.le.s32.totalorder 1, %s15
      %p165 = scmp.lt.s32.totalorder %s15, 7
      %p166 = pnand %p164, %p165
      %p167 = pneg %p166
      // Predicated region
      $region9: #{tpu_custom_call.1} parent=5 // pred_check
        _
      $region10: #{tpu_custom_call.1} parent=5 // pred_check_branch
        %169 = sbr.rel (%p166) target = $region12
      $region11: #{tpu_custom_call.1} parent=5 // pred_region
        %s170 = ssub.s32 %s15, 1
        // Predicated region
        $region13: #{tpu_custom_call.1} parent=11 // pred_check
          %p171 = pneg %p48
        $region14: #{tpu_custom_call.1} parent=11 // pred_check_branch
          %173 = sbr.rel (%p171) target = $region16
        $region15: #{tpu_custom_call.1} parent=11 // pred_region
          %s175 = ssub.s32 4096, 4096
          %176 = vsyncadd [#allocation3], %s175
          %s177 = sshll.u32 [#allocation2], 4
          %s178 = int_to_ptr.vmem [resolvable:$true] %s177
          %183 = dma.hbm_to_vmem [thread:$0]  %s0, 4096, %s178, [#allocation3], 256, 256, 16
        $region16: #{tpu_custom_call.1} parent=11 // pred_fallthru
          _
        // Predicated region
        $region17: #{tpu_custom_call.1} parent=11 // pred_check
          %p184 = pneg %p74
        $region18: #{tpu_custom_call.1} parent=11 // pred_check_branch
          %186 = sbr.rel (%p184) target = $region20
        $region19: #{tpu_custom_call.1} parent=11 // pred_region
          %s187 = smul.u32 32, %s25
          %s189 = ssub.s32 4096, 4096
          %190 = vsyncadd [#allocation6], %s189
          %s191 = smul.addr %s187, 128
          %s192 = scalar_lea.hbm %s1, %s191
          %s193 = sshll.u32 [#allocation5], 4
          %s194 = int_to_ptr.vmem [resolvable:$true] %s193
          %199 = dma.hbm_to_vmem [thread:$0]  %s192, 4096, %s194, [#allocation6], 128, 128, 8
        $region20: #{tpu_custom_call.1} parent=11 // pred_fallthru
          _
      $region12: #{tpu_custom_call.1} parent=5 // pred_fallthru
        _
      %p200 = scmp.lt.s32.totalorder %s15, 6
      // Predicated region
      $region21: #{tpu_custom_call.1} parent=5 // pred_check
        %p201 = pneg %p200
      $region22: #{tpu_custom_call.1} parent=5 // pred_check_branch
        %203 = sbr.rel (%p201) target = $region24
      $region23: #{tpu_custom_call.1} parent=5 // pred_region
        // Predicated region
        $region25: #{tpu_custom_call.1} parent=23 // pred_check
          %p204 = pneg %p96
        $region26: #{tpu_custom_call.1} parent=23 // pred_check_branch
          %206 = sbr.rel (%p204) target = $region28
        $region27: #{tpu_custom_call.1} parent=23 // pred_region
          %s207 = sand.u32 %s15, 1
          %s208 = scalar_lea.sflag [#allocation3], %s207
          %s209 = sand.u32 %s86, 1
          %s210 = smul.addr %s209, 512
          %s211 = scalar_lea.vmem [#allocation7], %s210
          %s212 = smul.u32 2, %s23
          %s214 = ssub.s32 8192, 8192
          %215 = vsyncadd %s208, %s214
          %s216 = smul.addr %s22, 64
          %s217 = sadd.s32 %s212, %s216
          %s218 = smul.addr %s217, 128
          %s219 = scalar_lea.hbm %s2, %s218
          %s220 = sshll.u32 %s211, 4
          %s221 = int_to_ptr.vmem [resolvable:$true] %s220
          %226 = dma.hbm_to_vmem [thread:$0]  %s219, 8192, %s221, %s208, 256, 256, 16
        $region28: #{tpu_custom_call.1} parent=23 // pred_fallthru
          _
        // Predicated region
        $region29: #{tpu_custom_call.1} parent=23 // pred_check
          %p227 = pneg %p124
        $region30: #{tpu_custom_call.1} parent=23 // pred_check_branch
          %229 = sbr.rel (%p227) target = $region32
        $region31: #{tpu_custom_call.1} parent=23 // pred_region
          %s230 = sand.u32 %s15, 1
          %s231 = scalar_lea.sflag [#allocation3], %s230
          %s232 = sand.u32 %s114, 1
          %s233 = smul.addr %s232, 512
          %s234 = scalar_lea.vmem [#allocation8], %s233
          %s235 = smul.u32 2, %s23
          %s237 = ssub.s32 8192, 8192
          %238 = vsyncadd %s231, %s237
          %s239 = smul.addr %s22, 64
          %s240 = sadd.s32 %s235, %s239
          %s241 = smul.addr %s240, 128
          %s242 = scalar_lea.hbm %s3, %s241
          %s243 = sshll.u32 %s234, 4
          %s244 = int_to_ptr.vmem [resolvable:$true] %s243
          %249 = dma.hbm_to_vmem [thread:$0]  %s242, 8192, %s244, %s231, 256, 256, 16
        $region32: #{tpu_custom_call.1} parent=23 // pred_fallthru
          _
      $region24: #{tpu_custom_call.1} parent=5 // pred_fallthru
        _
      %p250 = scmp.le.s32.totalorder 1, %s15
      %p251 = scmp.lt.s32.totalorder %s15, 7
      %p252 = pnand %p250, %p251
      %p253 = pneg %p252
      // Predicated region
      $region33: #{tpu_custom_call.1} parent=5 // pred_check
        _
      $region34: #{tpu_custom_call.1} parent=5 // pred_check_branch
        %255 = sbr.rel (%p252) target = $region36
      $region35: #{tpu_custom_call.1} parent=5 // pred_region
        %s256 = ssub.s32 %s15, 1
        // Predicated region
        $region37: #{tpu_custom_call.1} parent=35 // pred_check
          %p257 = pneg %p48
        $region38: #{tpu_custom_call.1} parent=35 // pred_check_branch
          %259 = sbr.rel (%p257) target = $region40
        $region39: #{tpu_custom_call.1} parent=35 // pred_region
          %260 = dma.done [#allocation3], 4096
        $region40: #{tpu_custom_call.1} parent=35 // pred_fallthru
          _
        // Predicated region
        $region41: #{tpu_custom_call.1} parent=35 // pred_check
          %p261 = pneg %p74
        $region42: #{tpu_custom_call.1} parent=35 // pred_check_branch
          %263 = sbr.rel (%p261) target = $region44
        $region43: #{tpu_custom_call.1} parent=35 // pred_region
          %264 = dma.done [#allocation6], 4096
        $region44: #{tpu_custom_call.1} parent=35 // pred_fallthru
          _
        %s265 = sand.u32 %s20, 1
        %s266 = scalar_lea.sflag [#allocation3], %s265
        %s267 = sand.u32 %s89, 1
        %s268 = smul.addr %s267, 512
        %s269 = scalar_lea.vmem [#allocation7], %s268
        // Predicated region
        $region45: #{tpu_custom_call.1} parent=35 // pred_check
          %p270 = pneg %p102
        $region46: #{tpu_custom_call.1} parent=35 // pred_check_branch
          %272 = sbr.rel (%p270) target = $region48
        $region47: #{tpu_custom_call.1} parent=35 // pred_region
          %273 = dma.done %s266, 8192
        $region48: #{tpu_custom_call.1} parent=35 // pred_fallthru
          _
        %s274 = sand.u32 %s20, 1
        %s275 = scalar_lea.sflag [#allocation3], %s274
        %s276 = sand.u32 %s117, 1
        %s277 = smul.addr %s276, 512
        %s278 = scalar_lea.vmem [#allocation8], %s277
        // Predicated region
        $region49: #{tpu_custom_call.1} parent=35 // pred_check
          %p279 = pneg %p130
        $region50: #{tpu_custom_call.1} parent=35 // pred_check_branch
          %281 = sbr.rel (%p279) target = $region52
        $region51: #{tpu_custom_call.1} parent=35 // pred_region
          %282 = dma.done %s275, 8192
        $region52: #{tpu_custom_call.1} parent=35 // pred_fallthru
          _
        %p283 = pneg %p48
        %p284 = pneg %p45
        %p285 = pneg %p74
        %p286 = pneg %p71
        %s287 = sand.u32 %s20, 1
        %s288 = scalar_lea.sflag [#allocation3], %s287
        %s289 = sand.u32 %s89, 1
        %s290 = smul.addr %s289, 512
        %s291 = scalar_lea.vmem [#allocation7], %s290
        %p292 = pneg %p102
        %p293 = pneg %p99
        %s294 = sand.u32 %s20, 1
        %s295 = scalar_lea.sflag [#allocation3], %s294
        %s296 = sand.u32 %s117, 1
        %s297 = smul.addr %s296, 512
        %s298 = scalar_lea.vmem [#allocation8], %s297
        %p299 = pneg %p130
        %p300 = pneg %p127
        %p301 = pneg %p156
        %p302 = pneg %p153
        %s303 = sand.u32 %s143, 1
        %s304 = scalar_lea.sflag [#allocation4], %s303
        %s305 = sand.u32 %s143, 1
        %s306 = smul.addr %s305, 128
        %s307 = scalar_lea.vmem [#allocation9], %s306
        %s308 = smul.u32 32, %s25
        %s309 = smul.u32 2, %s25
        %s310 = smul.u32 2, %s25
        %v311 = vld [vmem:[#allocation2] sm:$0xff]
        %v312 = vld [vmem:[#allocation2 + $0x8] sm:$0xff]
        %v313 = vld [vmem:[#allocation2 + $0x10] sm:$0xff]
        %v314 = vld [vmem:[#allocation2 + $0x18] sm:$0xff]
        %v315 = vld [vmem:[#allocation2 + $0x20] sm:$0xff]
        %v316 = vld [vmem:[#allocation2 + $0x28] sm:$0xff]
        %v317 = vld [vmem:[#allocation2 + $0x30] sm:$0xff]
        %v318 = vld [vmem:[#allocation2 + $0x38] sm:$0xff]
        %v319 = vld [vmem:[#allocation2 + $0x40] sm:$0xff]
        %v320 = vld [vmem:[#allocation2 + $0x48] sm:$0xff]
        %v321 = vld [vmem:[#allocation2 + $0x50] sm:$0xff]
        %v322 = vld [vmem:[#allocation2 + $0x58] sm:$0xff]
        %v323 = vld [vmem:[#allocation2 + $0x60] sm:$0xff]
        %v324 = vld [vmem:[#allocation2 + $0x68] sm:$0xff]
        %v325 = vld [vmem:[#allocation2 + $0x70] sm:$0xff]
        %v326 = vld [vmem:[#allocation2 + $0x78] sm:$0xff]
        %v327 = vld [vmem:[#allocation2 + $0x80] sm:$0xff]
        %v328 = vld [vmem:[#allocation2 + $0x88] sm:$0xff]
        %v329 = vld [vmem:[#allocation2 + $0x90] sm:$0xff]
        %v330 = vld [vmem:[#allocation2 + $0x98] sm:$0xff]
        %v331 = vld [vmem:[#allocation2 + $0xa0] sm:$0xff]
        %v332 = vld [vmem:[#allocation2 + $0xa8] sm:$0xff]
        %v333 = vld [vmem:[#allocation2 + $0xb0] sm:$0xff]
        %v334 = vld [vmem:[#allocation2 + $0xb8] sm:$0xff]
        %v335 = vld [vmem:[#allocation2 + $0xc0] sm:$0xff]
        %v336 = vld [vmem:[#allocation2 + $0xc8] sm:$0xff]
        %v337 = vld [vmem:[#allocation2 + $0xd0] sm:$0xff]
        %v338 = vld [vmem:[#allocation2 + $0xd8] sm:$0xff]
        %v339 = vld [vmem:[#allocation2 + $0xe0] sm:$0xff]
        %v340 = vld [vmem:[#allocation2 + $0xe8] sm:$0xff]
        %v341 = vld [vmem:[#allocation2 + $0xf0] sm:$0xff]
        %v342 = vld [vmem:[#allocation2 + $0xf8] sm:$0xff]
        %v343 = vld [vmem:[#allocation5] sm:$0xff]
        %v344 = vld [vmem:[#allocation5 + $0x8] sm:$0xff]
        %v345 = vld [vmem:[#allocation5 + $0x10] sm:$0xff]
        %v346 = vld [vmem:[#allocation5 + $0x18] sm:$0xff]
        %v347 = vld [vmem:[#allocation5 + $0x20] sm:$0xff]
        %v348 = vld [vmem:[#allocation5 + $0x28] sm:$0xff]
        %v349 = vld [vmem:[#allocation5 + $0x30] sm:$0xff]
        %v350 = vld [vmem:[#allocation5 + $0x38] sm:$0xff]
        %v351 = vld [vmem:[#allocation5 + $0x40] sm:$0xff]
        %v352 = vld [vmem:[#allocation5 + $0x48] sm:$0xff]
        %v353 = vld [vmem:[#allocation5 + $0x50] sm:$0xff]
        %v354 = vld [vmem:[#allocation5 + $0x58] sm:$0xff]
        %v355 = vld [vmem:[#allocation5 + $0x60] sm:$0xff]
        %v356 = vld [vmem:[#allocation5 + $0x68] sm:$0xff]
        %v357 = vld [vmem:[#allocation5 + $0x70] sm:$0xff]
        %v358 = vld [vmem:[#allocation5 + $0x78] sm:$0xff]
        %v359 = vld [vmem:[#allocation5 + $0x80] sm:$0xff]
        %v360 = vld [vmem:[#allocation5 + $0x88] sm:$0xff]
        %v361 = vld [vmem:[#allocation5 + $0x90] sm:$0xff]
        %v362 = vld [vmem:[#allocation5 + $0x98] sm:$0xff]
        %v363 = vld [vmem:[#allocation5 + $0xa0] sm:$0xff]
        %v364 = vld [vmem:[#allocation5 + $0xa8] sm:$0xff]
        %v365 = vld [vmem:[#allocation5 + $0xb0] sm:$0xff]
        %v366 = vld [vmem:[#allocation5 + $0xb8] sm:$0xff]
        %v367 = vld [vmem:[#allocation5 + $0xc0] sm:$0xff]
        %v368 = vld [vmem:[#allocation5 + $0xc8] sm:$0xff]
        %v369 = vld [vmem:[#allocation5 + $0xd0] sm:$0xff]
        %v370 = vld [vmem:[#allocation5 + $0xd8] sm:$0xff]
        %v371 = vld [vmem:[#allocation5 + $0xe0] sm:$0xff]
        %v372 = vld [vmem:[#allocation5 + $0xe8] sm:$0xff]
        %v373 = vld [vmem:[#allocation5 + $0xf0] sm:$0xff]
        %v374 = vld [vmem:[#allocation5 + $0xf8] sm:$0xff]
        %v375 = vld [vmem:[%s269] sm:$0xff]
        %v376 = vld [vmem:[%s269 + $0x8] sm:$0xff]
        %v377 = vld [vmem:[%s269 + $0x10] sm:$0xff]
        %v378 = vld [vmem:[%s269 + $0x18] sm:$0xff]
        %v379 = vld [vmem:[%s269 + $0x20] sm:$0xff]
        %v380 = vld [vmem:[%s269 + $0x28] sm:$0xff]
        %v381 = vld [vmem:[%s269 + $0x30] sm:$0xff]
        %v382 = vld [vmem:[%s269 + $0x38] sm:$0xff]
        %v383 = vld [vmem:[%s269 + $0x40] sm:$0xff]
        %v384 = vld [vmem:[%s269 + $0x48] sm:$0xff]
        %v385 = vld [vmem:[%s269 + $0x50] sm:$0xff]
        %v386 = vld [vmem:[%s269 + $0x58] sm:$0xff]
        %v387 = vld [vmem:[%s269 + $0x60] sm:$0xff]
        %v388 = vld [vmem:[%s269 + $0x68] sm:$0xff]
        %v389 = vld [vmem:[%s269 + $0x70] sm:$0xff]
        %v390 = vld [vmem:[%s269 + $0x78] sm:$0xff]
        %v391 = vld [vmem:[%s269 + $0x80] sm:$0xff]
        %v392 = vld [vmem:[%s269 + $0x88] sm:$0xff]
        %v393 = vld [vmem:[%s269 + $0x90] sm:$0xff]
        %v394 = vld [vmem:[%s269 + $0x98] sm:$0xff]
        %v395 = vld [vmem:[%s269 + $0xa0] sm:$0xff]
        %v396 = vld [vmem:[%s269 + $0xa8] sm:$0xff]
        %v397 = vld [vmem:[%s269 + $0xb0] sm:$0xff]
        %v398 = vld [vmem:[%s269 + $0xb8] sm:$0xff]
        %v399 = vld [vmem:[%s269 + $0xc0] sm:$0xff]
        %v400 = vld [vmem:[%s269 + $0xc8] sm:$0xff]
        %v401 = vld [vmem:[%s269 + $0xd0] sm:$0xff]
        %v402 = vld [vmem:[%s269 + $0xd8] sm:$0xff]
        %v403 = vld [vmem:[%s269 + $0xe0] sm:$0xff]
        %v404 = vld [vmem:[%s269 + $0xe8] sm:$0xff]
        %v405 = vld [vmem:[%s269 + $0xf0] sm:$0xff]
        %v406 = vld [vmem:[%s269 + $0xf8] sm:$0xff]
        %v407 = vld [vmem:[%s269 + $0x100] sm:$0xff]
        %v408 = vld [vmem:[%s269 + $0x108] sm:$0xff]
        %v409 = vld [vmem:[%s269 + $0x110] sm:$0xff]
        %v410 = vld [vmem:[%s269 + $0x118] sm:$0xff]
        %v411 = vld [vmem:[%s269 + $0x120] sm:$0xff]
        %v412 = vld [vmem:[%s269 + $0x128] sm:$0xff]
        %v413 = vld [vmem:[%s269 + $0x130] sm:$0xff]
        %v414 = vld [vmem:[%s269 + $0x138] sm:$0xff]
        %v415 = vld [vmem:[%s269 + $0x140] sm:$0xff]
        %v416 = vld [vmem:[%s269 + $0x148] sm:$0xff]
        %v417 = vld [vmem:[%s269 + $0x150] sm:$0xff]
        %v418 = vld [vmem:[%s269 + $0x158] sm:$0xff]
        %v419 = vld [vmem:[%s269 + $0x160] sm:$0xff]
        %v420 = vld [vmem:[%s269 + $0x168] sm:$0xff]
        %v421 = vld [vmem:[%s269 + $0x170] sm:$0xff]
        %v422 = vld [vmem:[%s269 + $0x178] sm:$0xff]
        %v423 = vld [vmem:[%s269 + $0x180] sm:$0xff]
        %v424 = vld [vmem:[%s269 + $0x188] sm:$0xff]
        %v425 = vld [vmem:[%s269 + $0x190] sm:$0xff]
        %v426 = vld [vmem:[%s269 + $0x198] sm:$0xff]
        %v427 = vld [vmem:[%s269 + $0x1a0] sm:$0xff]
        %v428 = vld [vmem:[%s269 + $0x1a8] sm:$0xff]
        %v429 = vld [vmem:[%s269 + $0x1b0] sm:$0xff]
        %v430 = vld [vmem:[%s269 + $0x1b8] sm:$0xff]
        %v431 = vld [vmem:[%s269 + $0x1c0] sm:$0xff]
        %v432 = vld [vmem:[%s269 + $0x1c8] sm:$0xff]
        %v433 = vld [vmem:[%s269 + $0x1d0] sm:$0xff]
        %v434 = vld [vmem:[%s269 + $0x1d8] sm:$0xff]
        %v435 = vld [vmem:[%s269 + $0x1e0] sm:$0xff]
        %v436 = vld [vmem:[%s269 + $0x1e8] sm:$0xff]
        %v437 = vld [vmem:[%s269 + $0x1f0] sm:$0xff]
        %v438 = vld [vmem:[%s269 + $0x1f8] sm:$0xff]
        %v439 = vld [vmem:[%s278] sm:$0xff]
        %v440 = vld [vmem:[%s278 + $0x8] sm:$0xff]
        %v441 = vld [vmem:[%s278 + $0x10] sm:$0xff]
        %v442 = vld [vmem:[%s278 + $0x18] sm:$0xff]
        %v443 = vld [vmem:[%s278 + $0x20] sm:$0xff]
        %v444 = vld [vmem:[%s278 + $0x28] sm:$0xff]
        %v445 = vld [vmem:[%s278 + $0x30] sm:$0xff]
        %v446 = vld [vmem:[%s278 + $0x38] sm:$0xff]
        %v447 = vld [vmem:[%s278 + $0x40] sm:$0xff]
        %v448 = vld [vmem:[%s278 + $0x48] sm:$0xff]
        %v449 = vld [vmem:[%s278 + $0x50] sm:$0xff]
        %v450 = vld [vmem:[%s278 + $0x58] sm:$0xff]
        %v451 = vld [vmem:[%s278 + $0x60] sm:$0xff]
        %v452 = vld [vmem:[%s278 + $0x68] sm:$0xff]
        %v453 = vld [vmem:[%s278 + $0x70] sm:$0xff]
        %v454 = vld [vmem:[%s278 + $0x78] sm:$0xff]
        %v455 = vld [vmem:[%s278 + $0x80] sm:$0xff]
        %v456 = vld [vmem:[%s278 + $0x88] sm:$0xff]
        %v457 = vld [vmem:[%s278 + $0x90] sm:$0xff]
        %v458 = vld [vmem:[%s278 + $0x98] sm:$0xff]
        %v459 = vld [vmem:[%s278 + $0xa0] sm:$0xff]
        %v460 = vld [vmem:[%s278 + $0xa8] sm:$0xff]
        %v461 = vld [vmem:[%s278 + $0xb0] sm:$0xff]
        %v462 = vld [vmem:[%s278 + $0xb8] sm:$0xff]
        %v463 = vld [vmem:[%s278 + $0xc0] sm:$0xff]
        %v464 = vld [vmem:[%s278 + $0xc8] sm:$0xff]
        %v465 = vld [vmem:[%s278 + $0xd0] sm:$0xff]
        %v466 = vld [vmem:[%s278 + $0xd8] sm:$0xff]
        %v467 = vld [vmem:[%s278 + $0xe0] sm:$0xff]
        %v468 = vld [vmem:[%s278 + $0xe8] sm:$0xff]
        %v469 = vld [vmem:[%s278 + $0xf0] sm:$0xff]
        %v470 = vld [vmem:[%s278 + $0xf8] sm:$0xff]
        %v471 = vld [vmem:[%s278 + $0x100] sm:$0xff]
        %v472 = vld [vmem:[%s278 + $0x108] sm:$0xff]
        %v473 = vld [vmem:[%s278 + $0x110] sm:$0xff]
        %v474 = vld [vmem:[%s278 + $0x118] sm:$0xff]
        %v475 = vld [vmem:[%s278 + $0x120] sm:$0xff]
        %v476 = vld [vmem:[%s278 + $0x128] sm:$0xff]
        %v477 = vld [vmem:[%s278 + $0x130] sm:$0xff]
        %v478 = vld [vmem:[%s278 + $0x138] sm:$0xff]
        %v479 = vld [vmem:[%s278 + $0x140] sm:$0xff]
        %v480 = vld [vmem:[%s278 + $0x148] sm:$0xff]
        %v481 = vld [vmem:[%s278 + $0x150] sm:$0xff]
        %v482 = vld [vmem:[%s278 + $0x158] sm:$0xff]
        %v483 = vld [vmem:[%s278 + $0x160] sm:$0xff]
        %v484 = vld [vmem:[%s278 + $0x168] sm:$0xff]
        %v485 = vld [vmem:[%s278 + $0x170] sm:$0xff]
        %v486 = vld [vmem:[%s278 + $0x178] sm:$0xff]
        %v487 = vld [vmem:[%s278 + $0x180] sm:$0xff]
        %v488 = vld [vmem:[%s278 + $0x188] sm:$0xff]
        %v489 = vld [vmem:[%s278 + $0x190] sm:$0xff]
        %v490 = vld [vmem:[%s278 + $0x198] sm:$0xff]
        %v491 = vld [vmem:[%s278 + $0x1a0] sm:$0xff]
        %v492 = vld [vmem:[%s278 + $0x1a8] sm:$0xff]
        %v493 = vld [vmem:[%s278 + $0x1b0] sm:$0xff]
        %v494 = vld [vmem:[%s278 + $0x1b8] sm:$0xff]
        %v495 = vld [vmem:[%s278 + $0x1c0] sm:$0xff]
        %v496 = vld [vmem:[%s278 + $0x1c8] sm:$0xff]
        %v497 = vld [vmem:[%s278 + $0x1d0] sm:$0xff]
        %v498 = vld [vmem:[%s278 + $0x1d8] sm:$0xff]
        %v499 = vld [vmem:[%s278 + $0x1e0] sm:$0xff]
        %v500 = vld [vmem:[%s278 + $0x1e8] sm:$0xff]
        %v501 = vld [vmem:[%s278 + $0x1f0] sm:$0xff]
        %v502 = vld [vmem:[%s278 + $0x1f8] sm:$0xff]
        %v503 = vsub.f32 %v375, %v439
        %v504 = vsub.f32 %v376, %v440
        %v505 = vsub.f32 %v377, %v441
        %v506 = vsub.f32 %v378, %v442
        %v507 = vsub.f32 %v379, %v443
        %v508 = vsub.f32 %v380, %v444
        %v509 = vsub.f32 %v381, %v445
        %v510 = vsub.f32 %v382, %v446
        %v511 = vsub.f32 %v383, %v447
        %v512 = vsub.f32 %v384, %v448
        %v513 = vsub.f32 %v385, %v449
        %v514 = vsub.f32 %v386, %v450
        %v515 = vsub.f32 %v387, %v451
        %v516 = vsub.f32 %v388, %v452
        %v517 = vsub.f32 %v389, %v453
        %v518 = vsub.f32 %v390, %v454
        %v519 = vsub.f32 %v391, %v455
        %v520 = vsub.f32 %v392, %v456
        %v521 = vsub.f32 %v393, %v457
        %v522 = vsub.f32 %v394, %v458
        %v523 = vsub.f32 %v395, %v459
        %v524 = vsub.f32 %v396, %v460
        %v525 = vsub.f32 %v397, %v461
        %v526 = vsub.f32 %v398, %v462
        %v527 = vsub.f32 %v399, %v463
        %v528 = vsub.f32 %v400, %v464
        %v529 = vsub.f32 %v401, %v465
        %v530 = vsub.f32 %v402, %v466
        %v531 = vsub.f32 %v403, %v467
        %v532 = vsub.f32 %v404, %v468
        %v533 = vsub.f32 %v405, %v469
        %v534 = vsub.f32 %v406, %v470
        %v535 = vsub.f32 %v407, %v471
        %v536 = vsub.f32 %v408, %v472
        %v537 = vsub.f32 %v409, %v473
        %v538 = vsub.f32 %v410, %v474
        %v539 = vsub.f32 %v411, %v475
        %v540 = vsub.f32 %v412, %v476
        %v541 = vsub.f32 %v413, %v477
        %v542 = vsub.f32 %v414, %v478
        %v543 = vsub.f32 %v415, %v479
        %v544 = vsub.f32 %v416, %v480
        %v545 = vsub.f32 %v417, %v481
        %v546 = vsub.f32 %v418, %v482
        %v547 = vsub.f32 %v419, %v483
        %v548 = vsub.f32 %v420, %v484
        %v549 = vsub.f32 %v421, %v485
        %v550 = vsub.f32 %v422, %v486
        %v551 = vsub.f32 %v423, %v487
        %v552 = vsub.f32 %v424, %v488
        %v553 = vsub.f32 %v425, %v489
        %v554 = vsub.f32 %v426, %v490
        %v555 = vsub.f32 %v427, %v491
        %v556 = vsub.f32 %v428, %v492
        %v557 = vsub.f32 %v429, %v493
        %v558 = vsub.f32 %v430, %v494
        %v559 = vsub.f32 %v431, %v495
        %v560 = vsub.f32 %v432, %v496
        %v561 = vsub.f32 %v433, %v497
        %v562 = vsub.f32 %v434, %v498
        %v563 = vsub.f32 %v435, %v499
        %v564 = vsub.f32 %v436, %v500
        %v565 = vsub.f32 %v437, %v501
        %v566 = vsub.f32 %v438, %v502
        %567 = vmatprep.subr.mxu0 %v504
        %568 = vmatpush1.msra.mxu0 %v503
        %569 = vmatprep.subr.mxu0 %v506
        %570 = vmatpush1.msra.mxu0 %v505
        %571 = vmatprep.subr.mxu0 %v508
        %572 = vmatpush1.msra.mxu0 %v507
        %573 = vmatprep.subr.mxu0 %v510
        %574 = vmatpush1.msra.mxu0 %v509
        %575 = vmatprep.subr.mxu0 %v512
        %576 = vmatpush1.msra.mxu0 %v511
        %577 = vmatprep.subr.mxu0 %v514
        %578 = vmatpush1.msra.mxu0 %v513
        %579 = vmatprep.subr.mxu0 %v516
        %580 = vmatpush1.msra.mxu0 %v515
        %581 = vmatprep.subr.mxu0 %v518
        %582 = vmatpush1.msra.mxu0 %v517
        %583 = vmatprep.subr.mxu0 %v520
        %584 = vmatpush1.msra.mxu0 %v519
        %585 = vmatprep.subr.mxu0 %v522
        %586 = vmatpush1.msra.mxu0 %v521
        %587 = vmatprep.subr.mxu0 %v524
        %588 = vmatpush1.msra.mxu0 %v523
        %589 = vmatprep.subr.mxu0 %v526
        %590 = vmatpush1.msra.mxu0 %v525
        %591 = vmatprep.subr.mxu0 %v528
        %592 = vmatpush1.msra.mxu0 %v527
        %593 = vmatprep.subr.mxu0 %v530
        %594 = vmatpush1.msra.mxu0 %v529
        %595 = vmatprep.subr.mxu0 %v532
        %596 = vmatpush1.msra.mxu0 %v531
        %597 = vmatprep.subr.mxu0 %v534
        %598 = vmatpush1.msra.mxu0 %v533
        %599 = vmatprep.subr.mxu0 %v536
        %600 = vmatpush1.msra.mxu0 %v535
        %601 = vmatprep.subr.mxu0 %v538
        %602 = vmatpush1.msra.mxu0 %v537
        %603 = vmatprep.subr.mxu0 %v540
        %604 = vmatpush1.msra.mxu0 %v539
        %605 = vmatprep.subr.mxu0 %v542
        %606 = vmatpush1.msra.mxu0 %v541
        %607 = vmatprep.subr.mxu0 %v544
        %608 = vmatpush1.msra.mxu0 %v543
        %609 = vmatprep.subr.mxu0 %v546
        %610 = vmatpush1.msra.mxu0 %v545
        %611 = vmatprep.subr.mxu0 %v548
        %612 = vmatpush1.msra.mxu0 %v547
        %613 = vmatprep.subr.mxu0 %v550
        %614 = vmatpush1.msra.mxu0 %v549
        %615 = vmatprep.subr.mxu0 %v552
        %616 = vmatpush1.msra.mxu0 %v551
        %617 = vmatprep.subr.mxu0 %v554
        %618 = vmatpush1.msra.mxu0 %v553
        %619 = vmatprep.subr.mxu0 %v556
        %620 = vmatpush1.msra.mxu0 %v555
        %621 = vmatprep.subr.mxu0 %v558
        %622 = vmatpush1.msra.mxu0 %v557
        %623 = vmatprep.subr.mxu0 %v560
        %624 = vmatpush1.msra.mxu0 %v559
        %625 = vmatprep.subr.mxu0 %v562
        %626 = vmatpush1.msra.mxu0 %v561
        %627 = vmatprep.subr.mxu0 %v564
        %628 = vmatpush1.msra.mxu0 %v563
        %629 = vmatprep.subr.mxu0 %v566
        %630 = vmatpush1.msra.mxu0 %v565
        %631 = vmatprep.mubr.f32.mxu0 %v312
        %632 = vmatmul.mubr.f32.gmra.mrb[0].mxu0 %v311
        %v633 = vpop.f32.mrb[0].mxu0
        %v634 = vadd.f32 0.0, %v633
        %v635 = vpop.f32.mrb[0].mxu0
        %v636 = vadd.f32 0.0, %v635
        %637 = vmatprep.mubr.f32.mxu0 %v314
        %638 = vmatmul.mubr.f32.gmra.mrb[0].mxu0 %v313
        %v639 = vpop.f32.mrb[0].mxu0
        %v640 = vadd.f32 0.0, %v639
        %v641 = vpop.f32.mrb[0].mxu0
        %v642 = vadd.f32 0.0, %v641
        %643 = vmatprep.mubr.f32.mxu0 %v316
        %644 = vmatmul.mubr.f32.gmra.mrb[0].mxu0 %v315
        %v645 = vpop.f32.mrb[0].mxu0
        %v646 = vadd.f32 0.0, %v645
        %v647 = vpop.f32.mrb[0].mxu0
        %v648 = vadd.f32 0.0, %v647
        %649 = vmatprep.mubr.f32.mxu0 %v318
        %650 = vmatmul.mubr.f32.gmra.mrb[0].mxu0 %v317
        %v651 = vpop.f32.mrb[0].mxu0
        %v652 = vadd.f32 0.0, %v651
        %v653 = vpop.f32.mrb[0].mxu0
        %v654 = vadd.f32 0.0, %v653
        %655 = vmatprep.mubr.f32.mxu0 %v320
        %656 = vmatmul.mubr.f32.gmra.mrb[0].mxu0 %v319
        %v657 = vpop.f32.mrb[0].mxu0
        %v658 = vadd.f32 0.0, %v657
        %v659 = vpop.f32.mrb[0].mxu0
        %v660 = vadd.f32 0.0, %v659
        %661 = vmatprep.mubr.f32.mxu0 %v322
        %662 = vmatmul.mubr.f32.gmra.mrb[0].mxu0 %v321
        %v663 = vpop.f32.mrb[0].mxu0
        %v664 = vadd.f32 0.0, %v663
        %v665 = vpop.f32.mrb[0].mxu0
        %v666 = vadd.f32 0.0, %v665
        %667 = vmatprep.mubr.f32.mxu0 %v324
        %668 = vmatmul.mubr.f32.gmra.mrb[0].mxu0 %v323
        %v669 = vpop.f32.mrb[0].mxu0
        %v670 = vadd.f32 0.0, %v669
        %v671 = vpop.f32.mrb[0].mxu0
        %v672 = vadd.f32 0.0, %v671
        %673 = vmatprep.mubr.f32.mxu0 %v326
        %674 = vmatmul.mubr.f32.gmra.mrb[0].mxu0 %v325
        %v675 = vpop.f32.mrb[0].mxu0
        %v676 = vadd.f32 0.0, %v675
        %v677 = vpop.f32.mrb[0].mxu0
        %v678 = vadd.f32 0.0, %v677
        %679 = vmatprep.mubr.f32.mxu0 %v328
        %680 = vmatmul.mubr.f32.gmra.mrb[0].mxu0 %v327
        %v681 = vpop.f32.mrb[0].mxu0
        %v682 = vadd.f32 0.0, %v681
        %v683 = vpop.f32.mrb[0].mxu0
        %v684 = vadd.f32 0.0, %v683
        %685 = vmatprep.mubr.f32.mxu0 %v330
        %686 = vmatmul.mubr.f32.gmra.mrb[0].mxu0 %v329
        %v687 = vpop.f32.mrb[0].mxu0
        %v688 = vadd.f32 0.0, %v687
        %v689 = vpop.f32.mrb[0].mxu0
        %v690 = vadd.f32 0.0, %v689
        %691 = vmatprep.mubr.f32.mxu0 %v332
        %692 = vmatmul.mubr.f32.gmra.mrb[0].mxu0 %v331
        %v693 = vpop.f32.mrb[0].mxu0
        %v694 = vadd.f32 0.0, %v693
        %v695 = vpop.f32.mrb[0].mxu0
        %v696 = vadd.f32 0.0, %v695
        %697 = vmatprep.mubr.f32.mxu0 %v334
        %698 = vmatmul.mubr.f32.gmra.mrb[0].mxu0 %v333
        %v699 = vpop.f32.mrb[0].mxu0
        %v700 = vadd.f32 0.0, %v699
        %v701 = vpop.f32.mrb[0].mxu0
        %v702 = vadd.f32 0.0, %v701
        %703 = vmatprep.mubr.f32.mxu0 %v336
        %704 = vmatmul.mubr.f32.gmra.mrb[0].mxu0 %v335
        %v705 = vpop.f32.mrb[0].mxu0
        %v706 = vadd.f32 0.0, %v705
        %v707 = vpop.f32.mrb[0].mxu0
        %v708 = vadd.f32 0.0, %v707
        %709 = vmatprep.mubr.f32.mxu0 %v338
        %710 = vmatmul.mubr.f32.gmra.mrb[0].mxu0 %v337
        %v711 = vpop.f32.mrb[0].mxu0
        %v712 = vadd.f32 0.0, %v711
        %v713 = vpop.f32.mrb[0].mxu0
        %v714 = vadd.f32 0.0, %v713
        %715 = vmatprep.mubr.f32.mxu0 %v340
        %716 = vmatmul.mubr.f32.gmra.mrb[0].mxu0 %v339
        %v717 = vpop.f32.mrb[0].mxu0
        %v718 = vadd.f32 0.0, %v717
        %v719 = vpop.f32.mrb[0].mxu0
        %v720 = vadd.f32 0.0, %v719
        %721 = vmatprep.mubr.f32.mxu0 %v342
        %722 = vmatmul.mubr.f32.gmra.mrb[0].mxu0 %v341
        %v723 = vpop.f32.mrb[0].mxu0
        %v724 = vadd.f32 0.0, %v723
        %v725 = vpop.f32.mrb[0].mxu0
        %v726 = vadd.f32 0.0, %v725
        %727 = vdwg.mxu0
        %728 = vmatprep.subr.mxu0 0.0
        %729 = vmatpush1.msra.mxu0 %v343
        %730 = vmatprep.subr.mxu0 0.0
        %731 = vmatpush1.msra.mxu0 %v344
        %732 = vmatprep.subr.mxu0 0.0
        %733 = vmatpush1.msra.mxu0 %v345
        %734 = vmatprep.subr.mxu0 0.0
        %735 = vmatpush1.msra.mxu0 %v346
        %736 = vmatprep.subr.mxu0 0.0
        %737 = vmatpush1.msra.mxu0 %v347
        %738 = vmatprep.subr.mxu0 0.0
        %739 = vmatpush1.msra.mxu0 %v348
        %740 = vmatprep.subr.mxu0 0.0
        %741 = vmatpush1.msra.mxu0 %v349
        %742 = vmatprep.subr.mxu0 0.0
        %743 = vmatpush1.msra.mxu0 %v350
        %744 = vmatprep.subr.mxu0 0.0
        %745 = vmatpush1.msra.mxu0 %v351
        %746 = vmatprep.subr.mxu0 0.0
        %747 = vmatpush1.msra.mxu0 %v352
        %748 = vmatprep.subr.mxu0 0.0
        %749 = vmatpush1.msra.mxu0 %v353
        %750 = vmatprep.subr.mxu0 0.0
        %751 = vmatpush1.msra.mxu0 %v354
        %752 = vmatprep.subr.mxu0 0.0
        %753 = vmatpush1.msra.mxu0 %v355
        %754 = vmatprep.subr.mxu0 0.0
        %755 = vmatpush1.msra.mxu0 %v356
        %756 = vmatprep.subr.mxu0 0.0
        %757 = vmatpush1.msra.mxu0 %v357
        %758 = vmatprep.subr.mxu0 0.0
        %759 = vmatpush1.msra.mxu0 %v358
        %760 = vmatprep.subr.mxu0 0.0
        %761 = vmatpush1.msra.mxu0 %v359
        %762 = vmatprep.subr.mxu0 0.0
        %763 = vmatpush1.msra.mxu0 %v360
        %764 = vmatprep.subr.mxu0 0.0
        %765 = vmatpush1.msra.mxu0 %v361
        %766 = vmatprep.subr.mxu0 0.0
        %767 = vmatpush1.msra.mxu0 %v362
        %768 = vmatprep.subr.mxu0 0.0
        %769 = vmatpush1.msra.mxu0 %v363
        %770 = vmatprep.subr.mxu0 0.0
        %771 = vmatpush1.msra.mxu0 %v364
        %772 = vmatprep.subr.mxu0 0.0
        %773 = vmatpush1.msra.mxu0 %v365
        %774 = vmatprep.subr.mxu0 0.0
        %775 = vmatpush1.msra.mxu0 %v366
        %776 = vmatprep.subr.mxu0 0.0
        %777 = vmatpush1.msra.mxu0 %v367
        %778 = vmatprep.subr.mxu0 0.0
        %779 = vmatpush1.msra.mxu0 %v368
        %780 = vmatprep.subr.mxu0 0.0
        %781 = vmatpush1.msra.mxu0 %v369
        %782 = vmatprep.subr.mxu0 0.0
        %783 = vmatpush1.msra.mxu0 %v370
        %784 = vmatprep.subr.mxu0 0.0
        %785 = vmatpush1.msra.mxu0 %v371
        %786 = vmatprep.subr.mxu0 0.0
        %787 = vmatpush1.msra.mxu0 %v372
        %788 = vmatprep.subr.mxu0 0.0
        %789 = vmatpush1.msra.mxu0 %v373
        %790 = vmatprep.subr.mxu0 0.0
        %791 = vmatpush1.msra.mxu0 %v374
        %792 = vmatprep.mubr.f32.mxu0 %v636
        %793 = vmatmul.mubr.f32.gmra.mrb[0].mxu0 %v634
        %v794 = vpop.f32.mrb[0].mxu0
        %v795 = vadd.f32 0.0, %v794
        %v796 = vpop.f32.mrb[0].mxu0
        %797 = vmatprep.mubr.f32.mxu0 %v642
        %798 = vmatmul.mubr.f32.gmra.mrb[0].mxu0 %v640
        %v799 = vpop.f32.mrb[0].mxu0
        %v800 = vadd.f32 0.0, %v799
        %v801 = vpop.f32.mrb[0].mxu0
        %802 = vmatprep.mubr.f32.mxu0 %v648
        %803 = vmatmul.mubr.f32.gmra.mrb[0].mxu0 %v646
        %v804 = vpop.f32.mrb[0].mxu0
        %v805 = vadd.f32 0.0, %v804
        %v806 = vpop.f32.mrb[0].mxu0
        %807 = vmatprep.mubr.f32.mxu0 %v654
        %808 = vmatmul.mubr.f32.gmra.mrb[0].mxu0 %v652
        %v809 = vpop.f32.mrb[0].mxu0
        %v810 = vadd.f32 0.0, %v809
        %v811 = vpop.f32.mrb[0].mxu0
        %812 = vmatprep.mubr.f32.mxu0 %v660
        %813 = vmatmul.mubr.f32.gmra.mrb[0].mxu0 %v658
        %v814 = vpop.f32.mrb[0].mxu0
        %v815 = vadd.f32 0.0, %v814
        %v816 = vpop.f32.mrb[0].mxu0
        %817 = vmatprep.mubr.f32.mxu0 %v666
        %818 = vmatmul.mubr.f32.gmra.mrb[0].mxu0 %v664
        %v819 = vpop.f32.mrb[0].mxu0
        %v820 = vadd.f32 0.0, %v819
        %v821 = vpop.f32.mrb[0].mxu0
        %822 = vmatprep.mubr.f32.mxu0 %v672
        %823 = vmatmul.mubr.f32.gmra.mrb[0].mxu0 %v670
        %v824 = vpop.f32.mrb[0].mxu0
        %v825 = vadd.f32 0.0, %v824
        %v826 = vpop.f32.mrb[0].mxu0
        %827 = vmatprep.mubr.f32.mxu0 %v678
        %828 = vmatmul.mubr.f32.gmra.mrb[0].mxu0 %v676
        %v829 = vpop.f32.mrb[0].mxu0
        %v830 = vadd.f32 0.0, %v829
        %v831 = vpop.f32.mrb[0].mxu0
        %832 = vmatprep.mubr.f32.mxu0 %v684
        %833 = vmatmul.mubr.f32.gmra.mrb[0].mxu0 %v682
        %v834 = vpop.f32.mrb[0].mxu0
        %v835 = vadd.f32 0.0, %v834
        %v836 = vpop.f32.mrb[0].mxu0
        %837 = vmatprep.mubr.f32.mxu0 %v690
        %838 = vmatmul.mubr.f32.gmra.mrb[0].mxu0 %v688
        %v839 = vpop.f32.mrb[0].mxu0
        %v840 = vadd.f32 0.0, %v839
        %v841 = vpop.f32.mrb[0].mxu0
        %842 = vmatprep.mubr.f32.mxu0 %v696
        %843 = vmatmul.mubr.f32.gmra.mrb[0].mxu0 %v694
        %v844 = vpop.f32.mrb[0].mxu0
        %v845 = vadd.f32 0.0, %v844
        %v846 = vpop.f32.mrb[0].mxu0
        %847 = vmatprep.mubr.f32.mxu0 %v702
        %848 = vmatmul.mubr.f32.gmra.mrb[0].mxu0 %v700
        %v849 = vpop.f32.mrb[0].mxu0
        %v850 = vadd.f32 0.0, %v849
        %v851 = vpop.f32.mrb[0].mxu0
        %852 = vmatprep.mubr.f32.mxu0 %v708
        %853 = vmatmul.mubr.f32.gmra.mrb[0].mxu0 %v706
        %v854 = vpop.f32.mrb[0].mxu0
        %v855 = vadd.f32 0.0, %v854
        %v856 = vpop.f32.mrb[0].mxu0
        %857 = vmatprep.mubr.f32.mxu0 %v714
        %858 = vmatmul.mubr.f32.gmra.mrb[0].mxu0 %v712
        %v859 = vpop.f32.mrb[0].mxu0
        %v860 = vadd.f32 0.0, %v859
        %v861 = vpop.f32.mrb[0].mxu0
        %862 = vmatprep.mubr.f32.mxu0 %v720
        %863 = vmatmul.mubr.f32.gmra.mrb[0].mxu0 %v718
        %v864 = vpop.f32.mrb[0].mxu0
        %v865 = vadd.f32 0.0, %v864
        %v866 = vpop.f32.mrb[0].mxu0
        %867 = vmatprep.mubr.f32.mxu0 %v726
        %868 = vmatmul.mubr.f32.gmra.mrb[0].mxu0 %v724
        %v869 = vpop.f32.mrb[0].mxu0
        %v870 = vadd.f32 0.0, %v869
        %v871 = vpop.f32.mrb[0].mxu0
        %872 = vdwg.mxu0
        %v873 = vand.u32 2147483647, %v795
        %v874 = vand.u32 2147483647, %v800
        %v875 = vand.u32 2147483647, %v805
        %v876 = vand.u32 2147483647, %v810
        %v877 = vand.u32 2147483647, %v815
        %v878 = vand.u32 2147483647, %v820
        %v879 = vand.u32 2147483647, %v825
        %v880 = vand.u32 2147483647, %v830
        %v881 = vand.u32 2147483647, %v835
        %v882 = vand.u32 2147483647, %v840
        %v883 = vand.u32 2147483647, %v845
        %v884 = vand.u32 2147483647, %v850
        %v885 = vand.u32 2147483647, %v855
        %v886 = vand.u32 2147483647, %v860
        %v887 = vand.u32 2147483647, %v865
        %v888 = vand.u32 2147483647, %v870
        %v889 = vadd.f32 %v873, 0.0
        %v890 = vadd.f32 %v874, 0.0
        %v891 = vadd.f32 %v875, 0.0
        %v892 = vadd.f32 %v876, 0.0
        %v893 = vadd.f32 %v877, 0.0
        %v894 = vadd.f32 %v878, 0.0
        %v895 = vadd.f32 %v879, 0.0
        %v896 = vadd.f32 %v880, 0.0
        %v897 = vadd.f32 %v881, 0.0
        %v898 = vadd.f32 %v882, 0.0
        %v899 = vadd.f32 %v883, 0.0
        %v900 = vadd.f32 %v884, 0.0
        %v901 = vadd.f32 %v885, 0.0
        %v902 = vadd.f32 %v886, 0.0
        %v903 = vadd.f32 %v887, 0.0
        %v904 = vadd.f32 %v888, 0.0
        %905 = vst [vmem:[%s307] sm:$0xff] %v889
        %906 = vst [vmem:[%s307 + $0x8] sm:$0xff] %v890
        %907 = vst [vmem:[%s307 + $0x10] sm:$0xff] %v891
        %908 = vst [vmem:[%s307 + $0x18] sm:$0xff] %v892
        %909 = vst [vmem:[%s307 + $0x20] sm:$0xff] %v893
        %910 = vst [vmem:[%s307 + $0x28] sm:$0xff] %v894
        %911 = vst [vmem:[%s307 + $0x30] sm:$0xff] %v895
        %912 = vst [vmem:[%s307 + $0x38] sm:$0xff] %v896
        %913 = vst [vmem:[%s307 + $0x40] sm:$0xff] %v897
        %914 = vst [vmem:[%s307 + $0x48] sm:$0xff] %v898
        %915 = vst [vmem:[%s307 + $0x50] sm:$0xff] %v899
        %916 = vst [vmem:[%s307 + $0x58] sm:$0xff] %v900
        %917 = vst [vmem:[%s307 + $0x60] sm:$0xff] %v901
        %918 = vst [vmem:[%s307 + $0x68] sm:$0xff] %v902
        %919 = vst [vmem:[%s307 + $0x70] sm:$0xff] %v903
        %920 = vst [vmem:[%s307 + $0x78] sm:$0xff] %v904
        %s921 = sand.u32 %s143, 1
        %s922 = scalar_lea.sflag [#allocation4], %s921
        %s923 = sand.u32 %s143, 1
        %s924 = smul.addr %s923, 128
        %s925 = scalar_lea.vmem [#allocation9], %s924
        // Predicated region
        $region53: #{tpu_custom_call.1} parent=35 // pred_check
          %p926 = pneg %p153
        $region54: #{tpu_custom_call.1} parent=35 // pred_check_branch
          %928 = sbr.rel (%p926) target = $region56
        $region55: #{tpu_custom_call.1} parent=35 // pred_region
          %s930 = ssub.s32 2048, 2048
          %931 = vsyncadd %s922, %s930
          %s932 = smul.addr %s24, 16
          %s933 = smul.addr %s932, 128
          %s934 = scalar_lea.hbm %s4, %s933
          %s935 = sshll.u32 %s925, 4
          %s936 = int_to_ptr.vmem [resolvable:$true] %s935
          %941 = dma.vmem_to_hbm [thread:$0]  %s936, 2048, %s934, %s922, 128, 128, 8
        $region56: #{tpu_custom_call.1} parent=35 // pred_fallthru
          _
      $region36: #{tpu_custom_call.1} parent=5 // pred_fallthru
        _
      %p942 = scmp.le.s32.totalorder 2, %s15
      // Predicated region
      $region57: #{tpu_custom_call.1} parent=5 // pred_check
        %p943 = pneg %p942
      $region58: #{tpu_custom_call.1} parent=5 // pred_check_branch
        %945 = sbr.rel (%p943) target = $region60
      $region59: #{tpu_custom_call.1} parent=5 // pred_region
        %s946 = ssub.s32 %s15, 2
        // Predicated region
        $region61: #{tpu_custom_call.1} parent=59 // pred_check
          %p947 = pneg %p159
        $region62: #{tpu_custom_call.1} parent=59 // pred_check_branch
          %949 = sbr.rel (%p947) target = $region64
        $region63: #{tpu_custom_call.1} parent=59 // pred_region
          %s950 = sand.u32 %s144, 1
          %s951 = scalar_lea.sflag [#allocation4], %s950
          %s952 = sand.u32 %s144, 1
          %s953 = smul.addr %s952, 128
          %s954 = scalar_lea.vmem [#allocation9], %s953
          %955 = dma.done %s951, 2048
        $region64: #{tpu_custom_call.1} parent=59 // pred_fallthru
          _
      $region60: #{tpu_custom_call.1} parent=5 // pred_fallthru
        _
    $region6: #{tpu_custom_call.1} parent=1 // loop_footer
      %s19 = sadd.s32 1, %s15
    $region7: #{tpu_custom_call.1} parent=1 // loop_footer_branch
      %14 = sbr.rel target = $region3
    $region8: #{tpu_custom_call.1} parent=1 // loop_exit
      _
    %956 = vsyncpa [#allocation3], 1
    %s957 = scalar_lea.sflag [#allocation3], 1
    %958 = vsyncpa %s957, 1
    %959 = vsyncpa [#allocation6], 1
    %960 = vsyncpa [#allocation4], 1
    %s961 = scalar_lea.sflag [#allocation4], 1
    %962 = vsyncpa %s961, 1

</llo_original>
